<compile_context>
chip_gen: v6e
topology: v6e:2x2x1
jax: 0.10.0
libtpu: 0.0.40
codegen_flags: <defaults>
</compile_context>

<pallas_src>
import jax
import jax.numpy as jnp
from jax import lax
from jax.experimental import pallas as pl
from jax.experimental.pallas import tpu as pltpu


# ----------------------------------------------------------------------------
# pltpu.roll direction probe (tiny one-off kernel, cached).
# The kernel needs out[:, p] = in[:, p + off]; guard against the rotate
# direction convention differing across jax versions.
# ----------------------------------------------------------------------------
_ROLL_MATCHES_JNP = None


def _roll_probe_kernel(x_ref, o_ref):
    o_ref[...] = pltpu.roll(x_ref[...], shift=1, axis=1)


def _roll_matches_jnp():
    global _ROLL_MATCHES_JNP
    if _ROLL_MATCHES_JNP is None:
        x = jnp.arange(8 * 128, dtype=jnp.float32).reshape(8, 128)
        y = pl.pallas_call(
            _roll_probe_kernel,
            out_shape=jax.ShapeDtypeStruct((8, 128), jnp.float32),
        )(x)
        _ROLL_MATCHES_JNP = bool(jnp.array_equal(y, jnp.roll(x, 1, axis=1)))
    return _ROLL_MATCHES_JNP


# ----------------------------------------------------------------------------
# Fused RDNet kernel (one grid step == one batch element, everything in VMEM)
# ----------------------------------------------------------------------------
def _make_rdnet_kernel(C0, G, L, B, H, W, n_params, roll_like_jnp):
    HW = H * W
    taps = [(dy, dx) for dy in (-1, 0, 1) for dx in (-1, 0, 1)]

    def kernel(*refs):
        x_ref = refs[0]
        p_refs = refs[1:1 + n_params]
        o_ref = refs[1 + n_params]
        dense_ref, patch_ref, cat_ref = refs[2 + n_params:]

        # ---- per-tap spatial validity masks (built once, reused by all convs)
        pos = lax.broadcasted_iota(jnp.int32, (1, HW), 1)
        xcol = pos % W
        yrow = pos // W

        def tap_mask(dy, dx):
            conds = []
            if dy == -1:
                conds.append(yrow >= 1)
            elif dy == 1:
                conds.append(yrow <= H - 2)
            if dx == -1:
                conds.append(xcol >= 1)
            elif dx == 1:
                conds.append(xcol <= W - 2)
            if not conds:
                return None
            m = conds[0]
            for c in conds[1:]:
                m = m & c
            return m

        masks = [tap_mask(dy, dx) for dy, dx in taps]

        def shifted(v, off):
            # out[:, p] = v[:, p + off]  (wrap-around; caller masks invalid taps)
            if off == 0:
                return v
            s = ((-off) if roll_like_jnp else off) % HW
            return pltpu.roll(v, shift=s, axis=1)

        def conv3x3(cin, w_ref, b_ref, relu):
            """3x3 conv (padding=1) on dense_ref[0:cin]; one K=9*cin matmul."""
            src = dense_ref[0:cin, :]                       # (cin, HW), lane-dense
            for k, (dy, dx) in enumerate(taps):
                v = shifted(src, dy * W + dx)
                if masks[k] is not None:
                    v = jnp.where(masks[k], v, 0.0)
                patch_ref[k * cin:(k + 1) * cin, :] = v     # sublane-aligned write
            acc = jnp.dot(w_ref[...], patch_ref[0:9 * cin, :],
                          preferred_element_type=jnp.float32)
            acc = acc + b_ref[...]                          # (Cout,1) lane-broadcast
            if relu:
                acc = jnp.maximum(acc, 0.0)
            return acc                                      # (Cout, HW)

        p_it = iter(p_refs)

        # ---- network input becomes block-0 input ----
        dense_ref[0:C0, :] = x_ref[0]

        for b in range(B):                                  # ResDenseBlocks
            cin = C0
            for _ in range(L):                              # DenseLayers
                w3, b3 = next(p_it), next(p_it)
                out = conv3x3(cin, w3, b3, relu=True)       # (G, HW)
                dense_ref[cin:cin + G, :] = out             # torch.cat(dim=1) in VMEM
                cin += G
            w1, b1 = next(p_it), next(p_it)
            d_all = dense_ref[0:cin, :]                     # full dense tensor
            h = jnp.dot(w1[...], d_all, preferred_element_type=jnp.float32)
            h = h + b1[...] + d_all[0:C0, :]                # conv1x1 + residual
            cat_ref[b * C0:(b + 1) * C0, :] = h             # block-output concat
            dense_ref[0:C0, :] = h                          # next block's input

        wf, bf = next(p_it), next(p_it)                     # fuse conv1x1 + relu
        fused = jnp.dot(wf[...], cat_ref[...],
                        preferred_element_type=jnp.float32) + bf[...]
        fused = jnp.maximum(fused, 0.0)

        dense_ref[0:C0, :] = fused                          # output conv3x3 + relu
        wo, bo = next(p_it), next(p_it)
        o_ref[0] = conv3x3(C0, wo, bo, relu=True)

    return kernel


# ----------------------------------------------------------------------------
# Wrapper: PyTorch-layout params -> kernel layout, single pallas_call
# ----------------------------------------------------------------------------
def _w3_to_2d(w):   # (O, I, 3, 3) -> (O, 9*I), column = (ky*3+kx)*I + i
    o, i = w.shape[0], w.shape[1]
    return jnp.transpose(w, (0, 2, 3, 1)).reshape(o, 9 * i)


def _w1_to_2d(w):   # (O, I, 1, 1) -> (O, I)
    return w.reshape(w.shape[0], w.shape[1])


def _b_to_col(b):   # (O,) -> (O, 1)
    return b.reshape(-1, 1)


def rdnet_forward(params, x_nchw):
    """Fused RDNet forward. x_nchw: (N, C, H, W) float32 -> (N, C, H, W)."""
    N, C0, H, W = x_nchw.shape
    HW = H * W
    blocks = params["blocks"]
    B = len(blocks)
    L = len(blocks[0]["dense"])
    G = blocks[0]["dense"][0]["w"].shape[0]
    C_dense = C0 + L * G                      # widest dense tensor
    C3_max = max(C0 + (L - 1) * G, C0)        # widest 3x3-conv input

    flat = []
    for blk in blocks:
        for layer in blk["dense"]:
            flat += [_w3_to_2d(layer["w"]), _b_to_col(layer["b"])]
        flat += [_w1_to_2d(blk["conv1x1"]["w"]), _b_to_col(blk["conv1x1"]["b"])]
    flat += [_w1_to_2d(params["fuse1x1"]["w"]), _b_to_col(params["fuse1x1"]["b"])]
    flat += [_w3_to_2d(params["out3x3"]["w"]), _b_to_col(params["out3x3"]["b"])]

    kernel = _make_rdnet_kernel(C0, G, L, B, H, W, len(flat), _roll_matches_jnp())

    out = pl.pallas_call(
        kernel,
        out_shape=jax.ShapeDtypeStruct((N, C0, HW), jnp.float32),
        grid=(N,),
        in_specs=[pl.BlockSpec((1, C0, HW), lambda n: (n, 0, 0))]
                 + [pl.BlockSpec(p.shape, lambda n: (0, 0)) for p in flat],
        out_specs=pl.BlockSpec((1, C0, HW), lambda n: (n, 0, 0)),
        scratch_shapes=[
            pltpu.VMEM((C_dense, HW), jnp.float32),       # growing dense tensor
            pltpu.VMEM((9 * C3_max, HW), jnp.float32),    # im2col patch
            pltpu.VMEM((B * C0, HW), jnp.float32),        # concat of block outputs
        ],
        compiler_params=pltpu.CompilerParams(dimension_semantics=("parallel",)),
    )(x_nchw.reshape(N, C0, HW), *flat)
    return out.reshape(N, C0, H, W)


# ----------------------------------------------------------------------------
# Deterministic synthetic params (PyTorch OIHW layout) and pure-JAX reference
# ----------------------------------------------------------------------------
def init_rdnet_params(key, in_chs, growth_rate, num_layer, num_blocks, scale=0.05):
    params = {"blocks": []}
    for _ in range(num_blocks):
        blk = {"dense": []}
        c = in_chs
        for _ in range(num_layer):
            key, k1, k2 = jax.random.split(key, 3)
            blk["dense"].append({
                "w": scale * jax.random.normal(k1, (growth_rate, c, 3, 3), jnp.float32),
                "b": scale * jax.random.normal(k2, (growth_rate,), jnp.float32),
            })
            c += growth_rate
        key, k1, k2 = jax.random.split(key, 3)
        blk["conv1x1"] = {
            "w": scale * jax.random.normal(k1, (in_chs, c, 1, 1), jnp.float32),
            "b": scale * jax.random.normal(k2, (in_chs,), jnp.float32),
        }
        params["blocks"].append(blk)
    key, k1, k2, k3, k4 = jax.random.split(key, 5)
    params["fuse1x1"] = {
        "w": scale * jax.random.normal(k1, (in_chs, num_blocks * in_chs, 1, 1), jnp.float32),
        "b": scale * jax.random.normal(k2, (in_chs,), jnp.float32),
    }
    params["out3x3"] = {
        "w": scale * jax.random.normal(k3, (in_chs, in_chs, 3, 3), jnp.float32),
        "b": scale * jax.random.normal(k4, (in_chs,), jnp.float32),
    }
    return params


def _conv2d_ref(x, w, b, padding):
    y = lax.conv_general_dilated(
        x, w, window_strides=(1, 1), padding=padding,
        dimension_numbers=("NCHW", "OIHW", "NCHW"),
        precision=lax.Precision.HIGHEST)
    return y + b[None, :, None, None]


def rdnet_reference(params, x):
    outs = []
    h = x
    for blk in params["blocks"]:
        d = h
        for layer in blk["dense"]:
            o = jax.nn.relu(_conv2d_ref(d, layer["w"], layer["b"], "SAME"))
            d = jnp.concatenate([d, o], axis=1)
        h = _conv2d_ref(d, blk["conv1x1"]["w"], blk["conv1x1"]["b"], "VALID") + h
        outs.append(h)
    o = jnp.concatenate(outs, axis=1)
    o = jax.nn.relu(_conv2d_ref(o, params["fuse1x1"]["w"], params["fuse1x1"]["b"], "VALID"))
    o = jax.nn.relu(_conv2d_ref(o, params["out3x3"]["w"], params["out3x3"]["b"], "SAME"))
    return o


if __name__ == "__main__":
    # Config consistent with the module: in_chs=8, growth_rate=8, num_layer=2,
    # num_blocks=2, activation='relu'.
    N, C, H, W = 2, 8, 16, 16
    growth_rate, num_layer, num_blocks = 8, 2, 2

    key = jax.random.PRNGKey(0)
    key, kx = jax.random.split(key)
    x = jax.random.normal(kx, (N, C, H, W), jnp.float32)     # NCHW, as in PyTorch
    params = init_rdnet_params(key, C, growth_rate, num_layer, num_blocks)

    _roll_matches_jnp()                                      # one-off probe

    fwd = jax.jit(rdnet_forward)
    y = fwd(params, x)
    jax.block_until_ready(y)
    assert y.shape == (N, C, H, W)

    # Check against a pure-JAX NCHW reference of the PyTorch module.
    y_ref = rdnet_reference(params, x)
    max_err = float(jnp.max(jnp.abs(y - y_ref)))
    assert max_err < 5e-3, f"kernel/reference mismatch: max abs err = {max_err}"
    print("KERNEL_OK")
</pallas_src>

<mosaic_0001>
module attributes {stable_mosaic.version = 11 : i64} {
  func.func @_roll_probe_kernel(%arg0: memref<8x128xf32, #tpu.memory_space<vmem>>, %arg1: memref<8x128xf32, #tpu.memory_space<vmem>>) attributes {dimension_semantics = [], scalar_prefetch = 0 : i64, scratch_operands = 0 : i64, tpu.core_type = #tpu.core_type<tc>} {
    %c0 = arith.constant 0 : index
    %c0_0 = arith.constant 0 : index
    %0 = vector.load %arg0[%c0, %c0_0] : memref<8x128xf32, #tpu.memory_space<vmem>>, vector<8x128xf32>
    %c1_i32 = arith.constant 1 : i32
    %1 = tpu.dynamic_rotate %0 by %c1_i32 dim 1 : vector<8x128xf32>, i32 -> vector<8x128xf32>
    %c0_1 = arith.constant 0 : index
    %c0_2 = arith.constant 0 : index
    %2 = vector.load %arg1[%c0_1, %c0_2] : memref<8x128xf32, #tpu.memory_space<vmem>>, vector<8x128xf32>
    tpu.vector_store %arg1[%c0_1, %c0_2], %1 {strides = array<i32>} : memref<8x128xf32, #tpu.memory_space<vmem>>, vector<8x128xf32>,
    return
  }
}

</mosaic_0001>

<llo_original>
// kernel: tpu_custom_call.1
$region0: #{tpu_custom_call.1}
  #allocation0 [shape = 'u32[]', space=smem, size = 0x4, offset = 0x4, fixed_abs, tag = 'smem constant byte address 0x4 - core index']
  #allocation1 [shape = 'u32[144,128]{1,0:T(1,128)}', space=vmem, size = 0x12000, scoped, tag = 'internal scratch']
  %s0 = inlined_call_operand.hbm [shape: f32[8,128], index: 0, kind: input, shape index: {}]
  %s1 = inlined_call_operand.hbm [shape: f32[8,128], index: 1, kind: output, shape index: {}]
  %s2 = sld [smem:[#allocation0]]
  $region18: #{tpu_custom_call.1} parent=0
    _
  %s4 = ssub.s32 1, %s2
  %s5 = scalar_select 0, %s4, %s2
  $region1: #{tpu_custom_call.1} parent=0
    #allocation2 [shape = 'u8[4096]{0}', space=vmem, size = 0x1000, scoped, tag = 'input window, operand 0, single buffered']
    #allocation3 [shape = 's32[1]{0}', space=sflag, size = 0x4, scoped, tag = 'scoped memory for tpu_custom_call.1']
    #allocation4 [shape = 's32[1]{0}', space=sflag, size = 0x4, scoped, tag = 'scoped memory for tpu_custom_call.1']
    #allocation5 [shape = 'u8[4096]{0}', space=vmem, size = 0x1000, scoped, tag = 'output window, operand 0, single buffered']
    %6 = vsyncpa [#allocation3], 0
    %7 = vsyncpa [#allocation4], 0
    // Predicated region
    $region2: #{tpu_custom_call.1} parent=1 // pred_check
      _
    $region3: #{tpu_custom_call.1} parent=1 // pred_check_branch
      %9 = sbr.rel (0) target = $region5
    $region4: #{tpu_custom_call.1} parent=1 // pred_region
      %s11 = ssub.s32 128, 128
      %12 = vsyncadd [#allocation3], %s11
      %s14 = sshll.u32 [#allocation2], 4
      %s15 = int_to_ptr.vmem [resolvable:$true] %s14
      %17 = dma.hbm_to_vmem [thread:$0]  %s0, 128, %s15, [#allocation3]
    $region5: #{tpu_custom_call.1} parent=1 // pred_fallthru
      _
    // Predicated region
    $region6: #{tpu_custom_call.1} parent=1 // pred_check
      _
    $region7: #{tpu_custom_call.1} parent=1 // pred_check_branch
      %19 = sbr.rel (0) target = $region9
    $region8: #{tpu_custom_call.1} parent=1 // pred_region
      %20 = dma.done [#allocation3], 128
    $region9: #{tpu_custom_call.1} parent=1 // pred_fallthru
      _
    %v21 = vld [vmem:[#allocation2] sm:$0xff]
    %22 = vrot.lane.b32.xlu0 %v21, 1
    %v23 = vpop.permute.xlu0 %22
    %24 = vst [vmem:[#allocation5] sm:$0xff] %v23
    // Predicated region
    $region10: #{tpu_custom_call.1} parent=1 // pred_check
      _
    $region11: #{tpu_custom_call.1} parent=1 // pred_check_branch
      %26 = sbr.rel (0) target = $region13
    $region12: #{tpu_custom_call.1} parent=1 // pred_region
      %s28 = ssub.s32 128, 128
      %29 = vsyncadd [#allocation4], %s28
      %s31 = sshll.u32 [#allocation5], 4
      %s32 = int_to_ptr.vmem [resolvable:$true] %s31
      %34 = dma.vmem_to_hbm [thread:$0]  %s32, 128, %s1, [#allocation4]
    $region13: #{tpu_custom_call.1} parent=1 // pred_fallthru
      _
    // Predicated region
    $region14: #{tpu_custom_call.1} parent=1 // pred_check
      _
    $region15: #{tpu_custom_call.1} parent=1 // pred_check_branch
      %36 = sbr.rel (0) target = $region17
    $region16: #{tpu_custom_call.1} parent=1 // pred_region
      %37 = dma.done [#allocation4], 128
    $region17: #{tpu_custom_call.1} parent=1 // pred_fallthru
      _
    %38 = vsyncpa [#allocation3], 1
    %39 = vsyncpa [#allocation4], 1

</llo_original>
